<compile_context>
chip_gen: v7x
topology: tpu7x:2x2x1
jax: 0.10.0
libtpu: 0.0.40
codegen_flags: <defaults>
</compile_context>

<pallas_src>
import jax
import jax.numpy as jnp
from jax.experimental import pallas as pl
from jax.experimental.pallas import tpu as pltpu


def _round_up(x, m):
    return (x + m - 1) // m * m


def _cdiv(a, b):
    return (a + b - 1) // b


# ---------------------------------------------------------------------------
# Kernel: one bf16 MXU contraction per modality on the current P tile.
#   refs = (pt_ref, W_0..W_{M-1}, out_0..out_{M-1})
#   pt_ref : (tile_p, R)   mxu_dtype
#   W_n    : (d_n,   R)    mxu_dtype   (pre-scaled, resident across grid steps)
#   out_n  : (tile_p, d_n) out_dtype   (f32 accumulation on the MXU)
# ---------------------------------------------------------------------------
def _make_kernel(num_mode):
    def kernel(*refs):
        pt_ref = refs[0]
        w_refs = refs[1:1 + num_mode]
        out_refs = refs[1 + num_mode:]
        pt = pt_ref[...]
        for w_ref, o_ref in zip(w_refs, out_refs):
            o_ref[...] = jax.lax.dot_general(
                pt, w_ref[...],
                dimension_numbers=(((1,), (1,)), ((), ())),
                preferred_element_type=jnp.float32,
            ).astype(o_ref.dtype)
    return kernel


def _vmem_capacity_bytes():
    try:
        return int(pltpu.get_tpu_info().vmem_capacity_bytes)
    except Exception:
        return 64 * 1024 * 1024   # conservative: v7x per-TensorCore VMEM


def _choose_tile_p(P, R, sum_d, in_bytes, out_bytes, budget_bytes):
    # Per-step VMEM: double-buffered pt tile + double-buffered per-modality
    # output tiles, plus the resident scaled factors (counted double-buffered
    # so the estimate stays valid even if single-buffering is unavailable).
    resident_w = 2 * sum_d * R * in_bytes
    per_row = 2 * R * in_bytes + 2 * sum_d * out_bytes
    avail = budget_bytes - resident_w
    if avail < 8 * per_row:
        avail = 8 * per_row
    tile_p = min(1024, avail // per_row)
    tile_p = min(tile_p, _round_up(P, 8))
    if tile_p >= 256:
        tile_p = (tile_p // 256) * 256       # 2x256 MXU-friendly (v6e/v7x)
    else:
        tile_p = max(8, (tile_p // 8) * 8)
    # Keep >= 2 grid steps when P allows, so the "parallel" axis can be
    # sharded across both TensorCores on megacore parts (v7x).
    if P > 8 and _cdiv(P, tile_p) < 2:
        tile_p = max(8, _round_up(_cdiv(P, 2), 8))
    return int(tile_p)


# ---------------------------------------------------------------------------
# Wrapper
# ---------------------------------------------------------------------------
def hidden_interaction_tensor_forward(pt_reps, factors, *,
                                      out_dtype=jnp.float32,
                                      mxu_dtype=jnp.bfloat16,
                                      tile_p=None):
    """pt_reps: (P, R).  factors: list of (d_i, R).  Returns list of (P, d_i)."""
    P, R = pt_reps.shape
    num_mode = len(factors)
    dims = [int(f.shape[0]) for f in factors]
    sum_d = sum(dims)
    in_bytes = jnp.dtype(mxu_dtype).itemsize
    out_bytes = jnp.dtype(out_dtype).itemsize

    # --- tiny wrapper-side precompute (hoisted out of the kernel) -----------
    # scale_n[r] = prod_{i != n} colsum(factors[i])[r]   (mask-and-multiply,
    # no division -> no 0/0).  Applied to the small factor rows, not to pt.
    colsums = [jnp.sum(f.astype(jnp.float32), axis=0) for f in factors]  # (R,)
    w_list = []
    for n in range(num_mode):
        s = jnp.ones((R,), jnp.float32)
        for i in range(num_mode):
            if i != n:
                s = s * colsums[i]
        w_list.append((factors[n].astype(jnp.float32) * s[None, :])
                      .astype(mxu_dtype))                                # (d_n, R)

    # --- tiling: VMEM-budget & generation aware ------------------------------
    vmem_cap = _vmem_capacity_bytes()
    budget = int(vmem_cap * 0.55)
    if tile_p is None:
        tile_p = _choose_tile_p(P, R, sum_d, in_bytes, out_bytes, budget)
    grid_p = _cdiv(P, tile_p)
    P_pad = grid_p * tile_p

    # pt: cast to MXU dtype once; pad only the rows actually needed.
    pt_mx = pt_reps.astype(mxu_dtype)
    if P_pad != P:
        pt_mx = jnp.pad(pt_mx, ((0, P_pad - P), (0, 0)))

    kernel = _make_kernel(num_mode)
    # Outputs carry the exact (P, d_n) shapes -> no post-call slicing.
    # (OOB rows of the last P tile are dropped by Pallas.)
    out_shapes = tuple(jax.ShapeDtypeStruct((P, d), out_dtype) for d in dims)
    out_specs = tuple(pl.BlockSpec((tile_p, d), lambda i: (i, 0)) for d in dims)
    pt_spec = pl.BlockSpec((tile_p, R), lambda i: (i, 0))

    flops = 2 * P_pad * sum_d * R
    bytes_accessed = (P_pad * R * in_bytes        # pt read
                      + sum_d * R * in_bytes      # scaled factors read (resident)
                      + P * sum_d * out_bytes)    # all outputs written
    cost = pl.CostEstimate(flops=flops, transcendentals=0,
                           bytes_accessed=bytes_accessed)
    cparams = pltpu.CompilerParams(
        dimension_semantics=("parallel",),
        vmem_limit_bytes=int(min(vmem_cap * 3 // 4, 112 * 1024 * 1024)),
    )

    def _call(single_buffer_resident):
        w_specs = []
        for d in dims:
            kwargs = {}
            if single_buffer_resident:
                # Constant index_map => no re-DMA; single-buffer to halve the
                # resident factors' VMEM footprint.
                kwargs["pipeline_mode"] = pl.Buffered(1)
            w_specs.append(pl.BlockSpec((d, R), lambda i: (0, 0), **kwargs))
        return pl.pallas_call(
            kernel,
            out_shape=out_shapes,
            grid_spec=pltpu.PrefetchScalarGridSpec(
                num_scalar_prefetch=0,
                grid=(grid_p,),
                in_specs=[pt_spec] + w_specs,
                out_specs=out_specs,
            ),
            compiler_params=cparams,
            cost_estimate=cost,
        )(pt_mx, *w_list)

    try:
        outs = _call(single_buffer_resident=True)
    except Exception:
        # Fallback for jax versions that reject single-buffered resident inputs.
        outs = _call(single_buffer_resident=False)

    return list(outs)


# ---------------------------------------------------------------------------
# Pure-JAX reference of the PyTorch semantics (f32)
# ---------------------------------------------------------------------------
def _reference_forward(pt_reps, factors):
    outs = []
    for n in range(len(factors)):
        v_hat = pt_reps
        for i, u in enumerate(factors):
            if i != n:
                v_hat = v_hat @ jnp.diag(jnp.sum(u, axis=0))
        outs.append(v_hat @ factors[n].T)
    return outs


if __name__ == "__main__":
    key = jax.random.PRNGKey(0)

    # Small synthetic setup: 3 modalities, P patients, rank R.
    P, R = 16, 32
    modality_dims = [64, 48, 32]

    keys = jax.random.split(key, 1 + len(modality_dims))
    pt_reps = jax.random.uniform(keys[0], (P, R), dtype=jnp.float32)
    factors = [
        jax.random.uniform(keys[1 + i], (d, R), dtype=jnp.float32)
        for i, d in enumerate(modality_dims)
    ]

    outs = hidden_interaction_tensor_forward(pt_reps, factors)
    outs = [jax.block_until_ready(o) for o in outs]

    refs = _reference_forward(pt_reps, factors)
    for o, ref in zip(outs, refs):
        assert o.shape == ref.shape, (o.shape, ref.shape)
        # bf16 MXU operands, f32 accumulation -> check relative error.
        rel = float(jnp.max(jnp.abs(o - ref)) / (jnp.max(jnp.abs(ref)) + 1e-30))
        assert rel < 3e-2, f"relative error {rel} vs reference too large"

    print("KERNEL_OK")
</pallas_src>

<mosaic_0001>
module attributes {stable_mosaic.version = 11 : i64} {
  func.func @kernel(%arg0: i32, %arg1: memref<8x32xbf16, #tpu.memory_space<vmem>>, %arg2: memref<64x32xbf16, #tpu.memory_space<vmem>>, %arg3: memref<48x32xbf16, #tpu.memory_space<vmem>>, %arg4: memref<32x32xbf16, #tpu.memory_space<vmem>>, %arg5: memref<8x64xf32, #tpu.memory_space<vmem>>, %arg6: memref<8x48xf32, #tpu.memory_space<vmem>>, %arg7: memref<8x32xf32, #tpu.memory_space<vmem>>) attributes {dimension_semantics = [#tpu.dimension_semantics<parallel>], iteration_bounds = array<i64: 2>, scalar_prefetch = 0 : i64, scratch_operands = 0 : i64, tpu.core_type = #tpu.core_type<tc>, window_params = [{transform_indices = @transform_0, window_bounds = array<i64: 8, 32>}, {pipeline_mode = #tpu.pipeline_mode<synchronous>, transform_indices = @transform_1, window_bounds = array<i64: 64, 32>}, {pipeline_mode = #tpu.pipeline_mode<synchronous>, transform_indices = @transform_2, window_bounds = array<i64: 48, 32>}, {pipeline_mode = #tpu.pipeline_mode<synchronous>, transform_indices = @transform_3, window_bounds = array<i64: 32, 32>}, {transform_indices = @transform_4, window_bounds = array<i64: 8, 64>}, {transform_indices = @transform_5, window_bounds = array<i64: 8, 48>}, {transform_indices = @transform_6, window_bounds = array<i64: 8, 32>}]} {
    %c0 = arith.constant 0 : index
    %c0_0 = arith.constant 0 : index
    %0 = vector.load %arg1[%c0, %c0_0] : memref<8x32xbf16, #tpu.memory_space<vmem>>, vector<8x32xbf16>
    %c0_1 = arith.constant 0 : index
    %c0_2 = arith.constant 0 : index
    %1 = vector.load %arg2[%c0_1, %c0_2] : memref<64x32xbf16, #tpu.memory_space<vmem>>, vector<64x32xbf16>
    %cst = arith.constant dense<0.000000e+00> : vector<8x64xf32>
    %2 = tpu.matmul %0, %1, %cst {dimension_numbers = #tpu.dot_dimension_numbers<[1], [1], [0], [0], [0, 0, 1, 0], [], []>} : vector<8x32xbf16>, vector<64x32xbf16>, vector<8x64xf32> -> vector<8x64xf32>
    %c0_3 = arith.constant 0 : index
    %c0_4 = arith.constant 0 : index
    %3 = vector.load %arg5[%c0_3, %c0_4] : memref<8x64xf32, #tpu.memory_space<vmem>>, vector<8x64xf32>
    tpu.vector_store %arg5[%c0_3, %c0_4], %2 {strides = array<i32>} : memref<8x64xf32, #tpu.memory_space<vmem>>, vector<8x64xf32>,
    %c0_5 = arith.constant 0 : index
    %c0_6 = arith.constant 0 : index
    %4 = vector.load %arg3[%c0_5, %c0_6] : memref<48x32xbf16, #tpu.memory_space<vmem>>, vector<48x32xbf16>
    %cst_7 = arith.constant dense<0.000000e+00> : vector<8x48xf32>
    %5 = tpu.matmul %0, %4, %cst_7 {dimension_numbers = #tpu.dot_dimension_numbers<[1], [1], [0], [0], [0, 0, 1, 0], [], []>} : vector<8x32xbf16>, vector<48x32xbf16>, vector<8x48xf32> -> vector<8x48xf32>
    %c0_8 = arith.constant 0 : index
    %c0_9 = arith.constant 0 : index
    %6 = vector.load %arg6[%c0_8, %c0_9] : memref<8x48xf32, #tpu.memory_space<vmem>>, vector<8x48xf32>
    tpu.vector_store %arg6[%c0_8, %c0_9], %5 {strides = array<i32>} : memref<8x48xf32, #tpu.memory_space<vmem>>, vector<8x48xf32>,
    %c0_10 = arith.constant 0 : index
    %c0_11 = arith.constant 0 : index
    %7 = vector.load %arg4[%c0_10, %c0_11] : memref<32x32xbf16, #tpu.memory_space<vmem>>, vector<32x32xbf16>
    %cst_12 = arith.constant dense<0.000000e+00> : vector<8x32xf32>
    %8 = tpu.matmul %0, %7, %cst_12 {dimension_numbers = #tpu.dot_dimension_numbers<[1], [1], [0], [0], [0, 0, 1, 0], [], []>} : vector<8x32xbf16>, vector<32x32xbf16>, vector<8x32xf32> -> vector<8x32xf32>
    %c0_13 = arith.constant 0 : index
    %c0_14 = arith.constant 0 : index
    %9 = vector.load %arg7[%c0_13, %c0_14] : memref<8x32xf32, #tpu.memory_space<vmem>>, vector<8x32xf32>
    tpu.vector_store %arg7[%c0_13, %c0_14], %8 {strides = array<i32>} : memref<8x32xf32, #tpu.memory_space<vmem>>, vector<8x32xf32>,
    return
  }
  func.func @transform_0(%arg0: i32) -> (i32, i32) {
    %c0_i32 = arith.constant 0 : i32
    %c0_i32_0 = arith.constant 0 : i32
    return %arg0, %c0_i32 : i32, i32
  }
  func.func @transform_1(%arg0: i32) -> (i32, i32) {
    %c0_i32 = arith.constant 0 : i32
    %c0_i32_0 = arith.constant 0 : i32
    %c0_i32_1 = arith.constant 0 : i32
    return %c0_i32, %c0_i32_0 : i32, i32
  }
  func.func @transform_2(%arg0: i32) -> (i32, i32) {
    %c0_i32 = arith.constant 0 : i32
    %c0_i32_0 = arith.constant 0 : i32
    %c0_i32_1 = arith.constant 0 : i32
    return %c0_i32, %c0_i32_0 : i32, i32
  }
  func.func @transform_3(%arg0: i32) -> (i32, i32) {
    %c0_i32 = arith.constant 0 : i32
    %c0_i32_0 = arith.constant 0 : i32
    %c0_i32_1 = arith.constant 0 : i32
    return %c0_i32, %c0_i32_0 : i32, i32
  }
  func.func @transform_4(%arg0: i32) -> (i32, i32) {
    %c0_i32 = arith.constant 0 : i32
    %c0_i32_0 = arith.constant 0 : i32
    return %arg0, %c0_i32 : i32, i32
  }
  func.func @transform_5(%arg0: i32) -> (i32, i32) {
    %c0_i32 = arith.constant 0 : i32
    %c0_i32_0 = arith.constant 0 : i32
    return %arg0, %c0_i32 : i32, i32
  }
  func.func @transform_6(%arg0: i32) -> (i32, i32) {
    %c0_i32 = arith.constant 0 : i32
    %c0_i32_0 = arith.constant 0 : i32
    return %arg0, %c0_i32 : i32, i32
  }
}

module attributes {stable_mosaic.version = 11 : i64} {
  func.func @kernel(%arg0: i32, %arg1: memref<8x32xbf16, #tpu.memory_space<vmem>>, %arg2: memref<64x32xbf16, #tpu.memory_space<vmem>>, %arg3: memref<48x32xbf16, #tpu.memory_space<vmem>>, %arg4: memref<32x32xbf16, #tpu.memory_space<vmem>>, %arg5: memref<8x64xf32, #tpu.memory_space<vmem>>, %arg6: memref<8x48xf32, #tpu.memory_space<vmem>>, %arg7: memref<8x32xf32, #tpu.memory_space<vmem>>) attributes {dimension_semantics = [#tpu.dimension_semantics<parallel>], iteration_bounds = array<i64: 2>, scalar_prefetch = 0 : i64, scratch_operands = 0 : i64, tpu.core_type = #tpu.core_type<tc>, window_params = [{transform_indices = @transform_0, window_bounds = array<i64: 8, 32>}, {pipeline_mode = #tpu.pipeline_mode<synchronous>, transform_indices = @transform_1, window_bounds = array<i64: 64, 32>}, {pipeline_mode = #tpu.pipeline_mode<synchronous>, transform_indices = @transform_2, window_bounds = array<i64: 48, 32>}, {pipeline_mode = #tpu.pipeline_mode<synchronous>, transform_indices = @transform_3, window_bounds = array<i64: 32, 32>}, {transform_indices = @transform_4, window_bounds = array<i64: 8, 64>}, {transform_indices = @transform_5, window_bounds = array<i64: 8, 48>}, {transform_indices = @transform_6, window_bounds = array<i64: 8, 32>}]} {
    %c0 = arith.constant 0 : index
    %c0_0 = arith.constant 0 : index
    %0 = vector.load %arg1[%c0, %c0_0] : memref<8x32xbf16, #tpu.memory_space<vmem>>, vector<8x32xbf16>
    %c0_1 = arith.constant 0 : index
    %c0_2 = arith.constant 0 : index
    %1 = vector.load %arg2[%c0_1, %c0_2] : memref<64x32xbf16, #tpu.memory_space<vmem>>, vector<64x32xbf16>
    %cst = arith.constant dense<0.000000e+00> : vector<8x64xf32>
    %2 = tpu.matmul %0, %1, %cst {dimension_numbers = #tpu.dot_dimension_numbers<[1], [1], [0], [0], [0, 0, 1, 0], [], []>} : vector<8x32xbf16>, vector<64x32xbf16>, vector<8x64xf32> -> vector<8x64xf32>
    %c0_3 = arith.constant 0 : index
    %c0_4 = arith.constant 0 : index
    %3 = vector.load %arg5[%c0_3, %c0_4] : memref<8x64xf32, #tpu.memory_space<vmem>>, vector<8x64xf32>
    tpu.vector_store %arg5[%c0_3, %c0_4], %2 {strides = array<i32>} : memref<8x64xf32, #tpu.memory_space<vmem>>, vector<8x64xf32>,
    %c0_5 = arith.constant 0 : index
    %c0_6 = arith.constant 0 : index
    %4 = vector.load %arg3[%c0_5, %c0_6] : memref<48x32xbf16, #tpu.memory_space<vmem>>, vector<48x32xbf16>
    %cst_7 = arith.constant dense<0.000000e+00> : vector<8x48xf32>
    %5 = tpu.matmul %0, %4, %cst_7 {dimension_numbers = #tpu.dot_dimension_numbers<[1], [1], [0], [0], [0, 0, 1, 0], [], []>} : vector<8x32xbf16>, vector<48x32xbf16>, vector<8x48xf32> -> vector<8x48xf32>
    %c0_8 = arith.constant 0 : index
    %c0_9 = arith.constant 0 : index
    %6 = vector.load %arg6[%c0_8, %c0_9] : memref<8x48xf32, #tpu.memory_space<vmem>>, vector<8x48xf32>
    tpu.vector_store %arg6[%c0_8, %c0_9], %5 {strides = array<i32>} : memref<8x48xf32, #tpu.memory_space<vmem>>, vector<8x48xf32>,
    %c0_10 = arith.constant 0 : index
    %c0_11 = arith.constant 0 : index
    %7 = vector.load %arg4[%c0_10, %c0_11] : memref<32x32xbf16, #tpu.memory_space<vmem>>, vector<32x32xbf16>
    %cst_12 = arith.constant dense<0.000000e+00> : vector<8x32xf32>
    %8 = tpu.matmul %0, %7, %cst_12 {dimension_numbers = #tpu.dot_dimension_numbers<[1], [1], [0], [0], [0, 0, 1, 0], [], []>} : vector<8x32xbf16>, vector<32x32xbf16>, vector<8x32xf32> -> vector<8x32xf32>
    %c0_13 = arith.constant 0 : index
    %c0_14 = arith.constant 0 : index
    %9 = vector.load %arg7[%c0_13, %c0_14] : memref<8x32xf32, #tpu.memory_space<vmem>>, vector<8x32xf32>
    tpu.vector_store %arg7[%c0_13, %c0_14], %8 {strides = array<i32>} : memref<8x32xf32, #tpu.memory_space<vmem>>, vector<8x32xf32>,
    return
  }
  func.func @transform_0(%arg0: i32) -> (i32, i32) {
    %c0_i32 = arith.constant 0 : i32
    %c0_i32_0 = arith.constant 0 : i32
    return %arg0, %c0_i32 : i32, i32
  }
  func.func @transform_1(%arg0: i32) -> (i32, i32) {
    %c0_i32 = arith.constant 0 : i32
    %c0_i32_0 = arith.constant 0 : i32
    %c0_i32_1 = arith.constant 0 : i32
    return %c0_i32, %c0_i32_0 : i32, i32
  }
  func.func @transform_2(%arg0: i32) -> (i32, i32) {
    %c0_i32 = arith.constant 0 : i32
    %c0_i32_0 = arith.constant 0 : i32
    %c0_i32_1 = arith.constant 0 : i32
    return %c0_i32, %c0_i32_0 : i32, i32
  }
  func.func @transform_3(%arg0: i32) -> (i32, i32) {
    %c0_i32 = arith.constant 0 : i32
    %c0_i32_0 = arith.constant 0 : i32
    %c0_i32_1 = arith.constant 0 : i32
    return %c0_i32, %c0_i32_0 : i32, i32
  }
  func.func @transform_4(%arg0: i32) -> (i32, i32) {
    %c0_i32 = arith.constant 0 : i32
    %c0_i32_0 = arith.constant 0 : i32
    return %arg0, %c0_i32 : i32, i32
  }
  func.func @transform_5(%arg0: i32) -> (i32, i32) {
    %c0_i32 = arith.constant 0 : i32
    %c0_i32_0 = arith.constant 0 : i32
    return %arg0, %c0_i32 : i32, i32
  }
  func.func @transform_6(%arg0: i32) -> (i32, i32) {
    %c0_i32 = arith.constant 0 : i32
    %c0_i32_0 = arith.constant 0 : i32
    return %arg0, %c0_i32 : i32, i32
  }
}

</mosaic_0001>

<llo_original>
// kernel: tpu_custom_call.1
$region0: #{tpu_custom_call.1}
  #allocation0 [shape = 'u32[]', space=smem, size = 0x4, offset = 0x4, fixed_abs, tag = 'smem constant byte address 0x4 - core index']
  #allocation1 [shape = 'u32[144,128]{1,0:T(1,128)}', space=vmem, size = 0x12000, scoped, tag = 'internal scratch']
  %s0 = inlined_call_operand.vmem [shape: bf16[16,32], index: 0, kind: input, shape index: {}]
  %s1 = inlined_call_operand.vmem [shape: bf16[64,32], index: 1, kind: input, shape index: {}]
  %s2 = inlined_call_operand.vmem [shape: bf16[48,32], index: 2, kind: input, shape index: {}]
  %s3 = inlined_call_operand.vmem [shape: bf16[32,32], index: 3, kind: input, shape index: {}]
  %s4 = inlined_call_operand.hbm [shape: f32[16,64], index: 4, kind: output, shape index: {0}]
  %s5 = inlined_call_operand.hbm [shape: f32[16,48], index: 5, kind: output, shape index: {1}]
  %s6 = inlined_call_operand.hbm [shape: f32[16,32], index: 6, kind: output, shape index: {2}]
  %7 = xla_tuple %s4, %s5, %s6
  %s8 = sld [smem:[#allocation0]]
  $region65: #{tpu_custom_call.1} parent=0
    _
  %s10 = ssub.s32 1, %s8
  %s11 = scalar_select 0, %s10, %s8
  $region1: #{tpu_custom_call.1} parent=0
    #allocation2 [shape = 'u8[8192]{0}', space=vmem, size = 0x2000, scoped, tag = 'output window, operand 0']
    #allocation3 [shape = 's32[2]{0}', space=sflag, size = 0x8, scoped, tag = 'scoped memory for tpu_custom_call.1']
    #allocation4 [shape = 'u8[8192]{0}', space=vmem, size = 0x2000, scoped, tag = 'output window, operand 1']
    #allocation5 [shape = 's32[2]{0}', space=sflag, size = 0x8, scoped, tag = 'scoped memory for tpu_custom_call.1']
    #allocation6 [shape = 'u8[8192]{0}', space=vmem, size = 0x2000, scoped, tag = 'output window, operand 2']
    %12 = vsyncpa [#allocation3], 0
    %s13 = scalar_lea.sflag [#allocation3], 1
    %14 = vsyncpa %s13, 0
    %15 = vsyncpa [#allocation5], 0
    %s16 = scalar_lea.sflag [#allocation5], 1
    %17 = vsyncpa %s16, 0
    loop: start=0, step=1, limit=4
    $region2: #{tpu_custom_call.1} parent=1 // loop_pre_header
      _
    $region3: #{tpu_custom_call.1} parent=1 // loop_header
      %s19 = sphi 0, %s23
      %p20 = scmp.ge.s32.totalorder %s19, 4
      %s29 = sphi 0, %s31
      %s32 = sphi 0, %s29
      %s33 = sphi 0, %s32
      %s49 = sphi 0, %s33
      %s53 = sphi 0, %s53
      %s55 = sphi 0, %s53
      %s56 = sphi 0, %s55
      %s70 = sphi 0, %s56
      %s74 = sphi 0, %s74
      %s76 = sphi 0, %s74
      %s77 = sphi 0, %s76
      %s91 = sphi 0, %s77
      %s95 = sphi 0, %s95
      %s97 = sphi 0, %s95
      %s98 = sphi 0, %s97
      %s112 = sphi 0, %s98
      %s118 = sphi 0, %s120
      %s121 = sphi 0, %s118
      %s122 = sphi 0, %s121
      %s138 = sphi 0, %s122
      %s144 = sphi 0, %s146
      %s147 = sphi 0, %s144
      %s148 = sphi 0, %s147
      %s164 = sphi 0, %s148
      %s170 = sphi 0, %s172
      %s173 = sphi 0, %s170
      %s174 = sphi 0, %s173
      %s190 = sphi 0, %s174
    $region4: #{tpu_custom_call.1} parent=1 // loop_header_branch
      %22 = sbr.rel (%p20) target = $region8
    $region5: #{tpu_custom_call.1} parent=1 // loop_body
      %s24 = ssub.s32 %s19, 1
      %s25 = ssub.s32 %s19, 2
      %s26 = sadd.s32 %s19, 1
      %s27 = ssub.s32 %s19, %s26
      %p28 = scmp.eq.s32.totalorder %s27, 0
      %s30 = sadd.s32 %s29, 1
      %s31 = scalar_select %p28, %s29, %s30
      %p34 = pneg %p28
      %p35 = scmp.eq.s32.totalorder %s19, 1
      %p36 = por %p34, %p35
      %p37 = scmp.ne.s32.totalorder %s29, %s32
      %p38 = scmp.eq.s32.totalorder %s19, 0
      %p39 = por %p37, %p38
      %p40 = scmp.ne.s32.totalorder %s29, %s32
      %p41 = scmp.eq.s32.totalorder %s24, 1
      %p42 = por %p40, %p41
      %p43 = scmp.ne.s32.totalorder %s32, %s33
      %p44 = scmp.eq.s32.totalorder %s24, 0
      %p45 = por %p43, %p44
      %p46 = scmp.ne.s32.totalorder %s32, %s33
      %p47 = scmp.eq.s32.totalorder %s25, 1
      %p48 = por %p46, %p47
      %p50 = scmp.ne.s32.totalorder %s33, %s49
      %p51 = scmp.eq.s32.totalorder %s25, 0
      %p52 = por %p50, %p51
      %s54 = sadd.s32 %s53, 1
      %p57 = scmp.eq.s32.totalorder %s19, 1
      %p58 = scmp.ne.s32.totalorder %s53, %s55
      %p59 = scmp.eq.s32.totalorder %s19, 0
      %p60 = por %p58, %p59
      %p61 = scmp.ne.s32.totalorder %s53, %s55
      %p62 = scmp.eq.s32.totalorder %s24, 1
      %p63 = por %p61, %p62
      %p64 = scmp.ne.s32.totalorder %s55, %s56
      %p65 = scmp.eq.s32.totalorder %s24, 0
      %p66 = por %p64, %p65
      %p67 = scmp.ne.s32.totalorder %s55, %s56
      %p68 = scmp.eq.s32.totalorder %s25, 1
      %p69 = por %p67, %p68
      %p71 = scmp.ne.s32.totalorder %s56, %s70
      %p72 = scmp.eq.s32.totalorder %s25, 0
      %p73 = por %p71, %p72
      %s75 = sadd.s32 %s74, 1
      %p78 = scmp.eq.s32.totalorder %s19, 1
      %p79 = scmp.ne.s32.totalorder %s74, %s76
      %p80 = scmp.eq.s32.totalorder %s19, 0
      %p81 = por %p79, %p80
      %p82 = scmp.ne.s32.totalorder %s74, %s76
      %p83 = scmp.eq.s32.totalorder %s24, 1
      %p84 = por %p82, %p83
      %p85 = scmp.ne.s32.totalorder %s76, %s77
      %p86 = scmp.eq.s32.totalorder %s24, 0
      %p87 = por %p85, %p86
      %p88 = scmp.ne.s32.totalorder %s76, %s77
      %p89 = scmp.eq.s32.totalorder %s25, 1
      %p90 = por %p88, %p89
      %p92 = scmp.ne.s32.totalorder %s77, %s91
      %p93 = scmp.eq.s32.totalorder %s25, 0
      %p94 = por %p92, %p93
      %s96 = sadd.s32 %s95, 1
      %p99 = scmp.eq.s32.totalorder %s19, 1
      %p100 = scmp.ne.s32.totalorder %s95, %s97
      %p101 = scmp.eq.s32.totalorder %s19, 0
      %p102 = por %p100, %p101
      %p103 = scmp.ne.s32.totalorder %s95, %s97
      %p104 = scmp.eq.s32.totalorder %s24, 1
      %p105 = por %p103, %p104
      %p106 = scmp.ne.s32.totalorder %s97, %s98
      %p107 = scmp.eq.s32.totalorder %s24, 0
      %p108 = por %p106, %p107
      %p109 = scmp.ne.s32.totalorder %s97, %s98
      %p110 = scmp.eq.s32.totalorder %s25, 1
      %p111 = por %p109, %p110
      %p113 = scmp.ne.s32.totalorder %s98, %s112
      %p114 = scmp.eq.s32.totalorder %s25, 0
      %p115 = por %p113, %p114
      %s116 = ssub.s32 %s19, %s26
      %p117 = scmp.eq.s32.totalorder %s116, 0
      %s119 = sadd.s32 %s118, 1
      %s120 = scalar_select %p117, %s118, %s119
      %p123 = pneg %p117
      %p124 = scmp.eq.s32.totalorder %s19, 1
      %p125 = por %p123, %p124
      %p126 = scmp.ne.s32.totalorder %s118, %s121
      %p127 = scmp.eq.s32.totalorder %s19, 0
      %p128 = por %p126, %p127
      %p129 = scmp.ne.s32.totalorder %s118, %s121
      %p130 = scmp.eq.s32.totalorder %s24, 1
      %p131 = por %p129, %p130
      %p132 = scmp.ne.s32.totalorder %s121, %s122
      %p133 = scmp.eq.s32.totalorder %s24, 0
      %p134 = por %p132, %p133
      %p135 = scmp.ne.s32.totalorder %s121, %s122
      %p136 = scmp.eq.s32.totalorder %s25, 1
      %p137 = por %p135, %p136
      %p139 = scmp.ne.s32.totalorder %s122, %s138
      %p140 = scmp.eq.s32.totalorder %s25, 0
      %p141 = por %p139, %p140
      %s142 = ssub.s32 %s19, %s26
      %p143 = scmp.eq.s32.totalorder %s142, 0
      %s145 = sadd.s32 %s144, 1
      %s146 = scalar_select %p143, %s144, %s145
      %p149 = pneg %p143
      %p150 = scmp.eq.s32.totalorder %s19, 1
      %p151 = por %p149, %p150
      %p152 = scmp.ne.s32.totalorder %s144, %s147
      %p153 = scmp.eq.s32.totalorder %s19, 0
      %p154 = por %p152, %p153
      %p155 = scmp.ne.s32.totalorder %s144, %s147
      %p156 = scmp.eq.s32.totalorder %s24, 1
      %p157 = por %p155, %p156
      %p158 = scmp.ne.s32.totalorder %s147, %s148
      %p159 = scmp.eq.s32.totalorder %s24, 0
      %p160 = por %p158, %p159
      %p161 = scmp.ne.s32.totalorder %s147, %s148
      %p162 = scmp.eq.s32.totalorder %s25, 1
      %p163 = por %p161, %p162
      %p165 = scmp.ne.s32.totalorder %s148, %s164
      %p166 = scmp.eq.s32.totalorder %s25, 0
      %p167 = por %p165, %p166
      %s168 = ssub.s32 %s19, %s26
      %p169 = scmp.eq.s32.totalorder %s168, 0
      %s171 = sadd.s32 %s170, 1
      %s172 = scalar_select %p169, %s170, %s171
      %p175 = pneg %p169
      %p176 = scmp.eq.s32.totalorder %s19, 1
      %p177 = por %p175, %p176
      %p178 = scmp.ne.s32.totalorder %s170, %s173
      %p179 = scmp.eq.s32.totalorder %s19, 0
      %p180 = por %p178, %p179
      %p181 = scmp.ne.s32.totalorder %s170, %s173
      %p182 = scmp.eq.s32.totalorder %s24, 1
      %p183 = por %p181, %p182
      %p184 = scmp.ne.s32.totalorder %s173, %s174
      %p185 = scmp.eq.s32.totalorder %s24, 0
      %p186 = por %p184, %p185
      %p187 = scmp.ne.s32.totalorder %s173, %s174
      %p188 = scmp.eq.s32.totalorder %s25, 1
      %p189 = por %p187, %p188
      %p191 = scmp.ne.s32.totalorder %s174, %s190
      %p192 = scmp.eq.s32.totalorder %s25, 0
      %p193 = por %p191, %p192
      %p194 = scmp.le.s32.totalorder 1, %s19
      %p195 = scmp.lt.s32.totalorder %s19, 3
      %p196 = pnand %p194, %p195
      %p197 = pneg %p196
      // Predicated region
      $region9: #{tpu_custom_call.1} parent=5 // pred_check
        _
      $region10: #{tpu_custom_call.1} parent=5 // pred_check_branch
        %199 = sbr.rel (%p196) target = $region12
      $region11: #{tpu_custom_call.1} parent=5 // pred_region
        %s200 = ssub.s32 %s19, 1
        // Predicated region
        $region13: #{tpu_custom_call.1} parent=11 // pred_check
          %p201 = pneg %p66
        $region14: #{tpu_custom_call.1} parent=11 // pred_check_branch
          %203 = sbr.rel (%p201) target = $region16
        $region15: #{tpu_custom_call.1} parent=11 // pred_region
          _
        $region16: #{tpu_custom_call.1} parent=11 // pred_fallthru
          _
        // Predicated region
        $region17: #{tpu_custom_call.1} parent=11 // pred_check
          %p204 = pneg %p87
        $region18: #{tpu_custom_call.1} parent=11 // pred_check_branch
          %206 = sbr.rel (%p204) target = $region20
        $region19: #{tpu_custom_call.1} parent=11 // pred_region
          _
        $region20: #{tpu_custom_call.1} parent=11 // pred_fallthru
          _
        // Predicated region
        $region21: #{tpu_custom_call.1} parent=11 // pred_check
          %p207 = pneg %p108
        $region22: #{tpu_custom_call.1} parent=11 // pred_check_branch
          %209 = sbr.rel (%p207) target = $region24
        $region23: #{tpu_custom_call.1} parent=11 // pred_region
          _
        $region24: #{tpu_custom_call.1} parent=11 // pred_fallthru
          _
      $region12: #{tpu_custom_call.1} parent=5 // pred_fallthru
        _
      %p210 = scmp.lt.s32.totalorder %s19, 2
      // Predicated region
      $region25: #{tpu_custom_call.1} parent=5 // pred_check
        %p211 = pneg %p210
      $region26: #{tpu_custom_call.1} parent=5 // pred_check_branch
        %213 = sbr.rel (%p211) target = $region28
      $region27: #{tpu_custom_call.1} parent=5 // pred_region
        // Predicated region
        $region29: #{tpu_custom_call.1} parent=27 // pred_check
          %p214 = pneg %p39
        $region30: #{tpu_custom_call.1} parent=27 // pred_check_branch
          %216 = sbr.rel (%p214) target = $region32
        $region31: #{tpu_custom_call.1} parent=27 // pred_region
          %p217 = scmp.lt.s32.totalorder %s19, 1
          %s218 = scalar_select %p217, %s19, 1
          %s219 = smul.addr %s218, 4
          %s220 = scalar_lea.vmem %s0, %s219
        $region32: #{tpu_custom_call.1} parent=27 // pred_fallthru
          _
      $region28: #{tpu_custom_call.1} parent=5 // pred_fallthru
        _
      %p221 = scmp.le.s32.totalorder 1, %s19
      %p222 = scmp.lt.s32.totalorder %s19, 3
      %p223 = pnand %p221, %p222
      %p224 = pneg %p223
      // Predicated region
      $region33: #{tpu_custom_call.1} parent=5 // pred_check
        _
      $region34: #{tpu_custom_call.1} parent=5 // pred_check_branch
        %226 = sbr.rel (%p223) target = $region36
      $region35: #{tpu_custom_call.1} parent=5 // pred_region
        %s227 = ssub.s32 %s19, 1
        %p228 = scmp.lt.s32.totalorder %s24, 1
        %s229 = scalar_select %p228, %s24, 1
        %s230 = smul.addr %s229, 4
        %s231 = scalar_lea.vmem %s0, %s230
        %p232 = pneg %p45
        %p233 = pneg %p42
        %p234 = pneg %p66
        %p235 = pneg %p63
        %p236 = pneg %p87
        %p237 = pneg %p84
        %p238 = pneg %p108
        %p239 = pneg %p105
        %p240 = pneg %p134
        %p241 = pneg %p131
        %s242 = sand.u32 %s121, 1
        %s243 = scalar_lea.sflag [#allocation3], %s242
        %s244 = sand.u32 %s121, 1
        %s245 = smul.addr %s244, 8
        %s246 = scalar_lea.vmem [#allocation2], %s245
        %p247 = pneg %p160
        %p248 = pneg %p157
        %s249 = sand.u32 %s24, 1
        %s250 = scalar_lea.sflag [#allocation5], %s249
        %s251 = sand.u32 %s147, 1
        %s252 = smul.addr %s251, 8
        %s253 = scalar_lea.vmem [#allocation4], %s252
        %p254 = pneg %p186
        %p255 = pneg %p183
        %s256 = sand.u32 %s24, 1
        %s257 = scalar_lea.sflag [#allocation5], %s256
        %s258 = sand.u32 %s173, 1
        %s259 = smul.addr %s258, 8
        %s260 = scalar_lea.vmem [#allocation6], %s259
        %p261 = scmp.lt.s32.totalorder %s24, 1
        %s262 = scalar_select %p261, %s24, 1
        %s263 = smul.addr %s262, 4
        %s264 = scalar_lea.vmem %s0, %s263
        %v266 = vld [vmem:[%s264] sm:$0xf]
        %v267 = vld [vmem:[%s1] sm:$0xf]
        %v268 = vld [vmem:[%s1 + $0x4] sm:$0xf]
        %v269 = vld [vmem:[%s1 + $0x8] sm:$0xf]
        %v270 = vld [vmem:[%s1 + $0xc] sm:$0xf]
        %v271 = vld [vmem:[%s1 + $0x10] sm:$0xf]
        %v272 = vld [vmem:[%s1 + $0x14] sm:$0xf]
        %v273 = vld [vmem:[%s1 + $0x18] sm:$0xf]
        %v274 = vld [vmem:[%s1 + $0x1c] sm:$0xf]
        %v283 = vunpack.c.l.b16 %v267
        %v284 = vunpack.c.l.b16 %v268
        %v285 = vunpack.c.l.b16 %v269
        %v286 = vunpack.c.l.b16 %v270
        %v287 = vunpack.c.l.b16 %v271
        %v288 = vunpack.c.l.b16 %v272
        %v289 = vunpack.c.l.b16 %v273
        %v290 = vunpack.c.l.b16 %v274
        %v291 = vpack.c.b16 %v284, %v283
        %v292 = vpack.c.b16 %v286, %v285
        %v293 = vpack.c.b16 %v288, %v287
        %v294 = vpack.c.b16 %v290, %v289
        %vm295 = vcmask 261120
        %v297 = vsel %vm295, %v266, 0
        %v300 = vsel %vm295, %v291, 0
        %v303 = vsel %vm295, %v292, 0
        %v306 = vsel %vm295, %v293, 0
        %v309 = vsel %vm295, %v294, 0
        %311 = vmatprep.subr.bf16.mxu0 0
        %312 = vmatpush1.bf16.xpose.msra.mxu0 %v300
        %313 = vmatprep.subr.bf16.mxu0 0
        %314 = vmatpush1.bf16.xpose.msra.mxu0 %v303
        %315 = vmatprep.subr.bf16.mxu0 0
        %316 = vmatpush1.bf16.xpose.msra.mxu0 %v306
        %317 = vmatprep.subr.bf16.mxu0 0
        %318 = vmatpush1.bf16.xpose.msra.mxu0 %v309
        %319 = vmatprep.subr.bf16.mxu0 0
        %320 = vmatpush1.bf16.xpose.msra.mxu0 0
        %321 = vmatprep.subr.bf16.mxu0 0
        %322 = vmatpush1.bf16.xpose.msra.mxu0 0
        %323 = vmatprep.subr.bf16.mxu0 0
        %324 = vmatpush1.bf16.xpose.msra.mxu0 0
        %325 = vmatprep.subr.bf16.mxu0 0
        %326 = vmatpush1.bf16.xpose.msra.mxu0 0
        %327 = vmatprep.subr.bf16.mxu0 0
        %328 = vmatpush1.bf16.xpose.msra.mxu0 0
        %329 = vmatprep.subr.bf16.mxu0 0
        %330 = vmatpush1.bf16.xpose.msra.mxu0 0
        %331 = vmatprep.subr.bf16.mxu0 0
        %332 = vmatpush1.bf16.xpose.msra.mxu0 0
        %333 = vmatprep.subr.bf16.mxu0 0
        %334 = vmatpush1.bf16.xpose.msra.mxu0 0
        %335 = vmatprep.subr.bf16.mxu0 0
        %336 = vmatpush1.bf16.xpose.msra.mxu0 0
        %337 = vmatprep.subr.bf16.mxu0 0
        %338 = vmatpush1.bf16.xpose.msra.mxu0 0
        %339 = vmatprep.subr.bf16.mxu0 0
        %340 = vmatpush1.bf16.xpose.msra.mxu0 0
        %341 = vmatprep.subr.bf16.mxu0 0
        %342 = vmatpush1.bf16.xpose.msra.mxu0 0
        %343 = vmatprep.mubr.bf16.mxu0 0
        %344 = vmatmul.mubr.bf16.gmra.mrb[0].mxu0 %v297
        %v345 = vpop.f32.mrb[0].mxu0
        %v346 = vadd.f32 0.0, %v345
        %v347 = vpop.f32.mrb[0].mxu0
        %v348 = vpop.f32.mrb[0].mxu0
        %v349 = vpop.f32.mrb[0].mxu0
        %350 = vdwg.mxu0
        %vm351 = vcmask 523264
        %352 = vst.msk [vmem:[%s246] sm:$0xff] %vm351, %v346
        %v353 = vld [vmem:[%s2] sm:$0xf]
        %v354 = vld [vmem:[%s2 + $0x4] sm:$0xf]
        %v355 = vld [vmem:[%s2 + $0x8] sm:$0xf]
        %v356 = vld [vmem:[%s2 + $0xc] sm:$0xf]
        %v357 = vld [vmem:[%s2 + $0x10] sm:$0xf]
        %v358 = vld [vmem:[%s2 + $0x14] sm:$0xf]
        %v365 = vunpack.c.l.b16 %v353
        %v366 = vunpack.c.l.b16 %v354
        %v367 = vunpack.c.l.b16 %v355
        %v368 = vunpack.c.l.b16 %v356
        %v369 = vunpack.c.l.b16 %v357
        %v370 = vunpack.c.l.b16 %v358
        %v371 = vpack.c.b16 %v366, %v365
        %v372 = vpack.c.b16 %v368, %v367
        %v373 = vpack.c.b16 %v370, %v369
        %v375 = vsel %vm295, %v371, 0
        %v378 = vsel %vm295, %v372, 0
        %v381 = vsel %vm295, %v373, 0
        %383 = vmatprep.subr.bf16.mxu0 0
        %384 = vmatpush1.bf16.xpose.msra.mxu0 %v375
        %385 = vmatprep.subr.bf16.mxu0 0
        %386 = vmatpush1.bf16.xpose.msra.mxu0 %v378
        %387 = vmatprep.subr.bf16.mxu0 0
        %388 = vmatpush1.bf16.xpose.msra.mxu0 %v381
        %389 = vmatprep.subr.bf16.mxu0 0
        %390 = vmatpush1.bf16.xpose.msra.mxu0 0
        %391 = vmatprep.subr.bf16.mxu0 0
        %392 = vmatpush1.bf16.xpose.msra.mxu0 0
        %393 = vmatprep.subr.bf16.mxu0 0
        %394 = vmatpush1.bf16.xpose.msra.mxu0 0
        %395 = vmatprep.subr.bf16.mxu0 0
        %396 = vmatpush1.bf16.xpose.msra.mxu0 0
        %397 = vmatprep.subr.bf16.mxu0 0
        %398 = vmatpush1.bf16.xpose.msra.mxu0 0
        %399 = vmatprep.subr.bf16.mxu0 0
        %400 = vmatpush1.bf16.xpose.msra.mxu0 0
        %401 = vmatprep.subr.bf16.mxu0 0
        %402 = vmatpush1.bf16.xpose.msra.mxu0 0
        %403 = vmatprep.subr.bf16.mxu0 0
        %404 = vmatpush1.bf16.xpose.msra.mxu0 0
        %405 = vmatprep.subr.bf16.mxu0 0
        %406 = vmatpush1.bf16.xpose.msra.mxu0 0
        %407 = vmatprep.subr.bf16.mxu0 0
        %408 = vmatpush1.bf16.xpose.msra.mxu0 0
        %409 = vmatprep.subr.bf16.mxu0 0
        %410 = vmatpush1.bf16.xpose.msra.mxu0 0
        %411 = vmatprep.subr.bf16.mxu0 0
        %412 = vmatpush1.bf16.xpose.msra.mxu0 0
        %413 = vmatprep.subr.bf16.mxu0 0
        %414 = vmatpush1.bf16.xpose.msra.mxu0 0
        %415 = vmatprep.mubr.bf16.mxu0 0
        %416 = vmatmul.mubr.bf16.gmra.mrb[0].mxu0 %v297
        %v417 = vpop.f32.mrb[0].mxu0
        %v418 = vadd.f32 0.0, %v417
        %v419 = vpop.f32.mrb[0].mxu0
        %v420 = vpop.f32.mrb[0].mxu0
        %v421 = vpop.f32.mrb[0].mxu0
        %422 = vdwg.mxu0
        %vm423 = vcmask 392192
        %424 = vst.msk [vmem:[%s253] sm:$0xff] %vm423, %v418
        %v425 = vld [vmem:[%s3] sm:$0xf]
        %v426 = vld [vmem:[%s3 + $0x4] sm:$0xf]
        %v427 = vld [vmem:[%s3 + $0x8] sm:$0xf]
        %v428 = vld [vmem:[%s3 + $0xc] sm:$0xf]
        %v433 = vunpack.c.l.b16 %v425
        %v434 = vunpack.c.l.b16 %v426
        %v435 = vunpack.c.l.b16 %v427
        %v436 = vunpack.c.l.b16 %v428
        %v437 = vpack.c.b16 %v434, %v433
        %v438 = vpack.c.b16 %v436, %v435
        %v440 = vsel %vm295, %v437, 0
        %v443 = vsel %vm295, %v438, 0
        %445 = vmatprep.subr.bf16.mxu0 0
        %446 = vmatpush1.bf16.xpose.msra.mxu0 %v440
        %447 = vmatprep.subr.bf16.mxu0 0
        %448 = vmatpush1.bf16.xpose.msra.mxu0 %v443
        %449 = vmatprep.subr.bf16.mxu0 0
        %450 = vmatpush1.bf16.xpose.msra.mxu0 0
        %451 = vmatprep.subr.bf16.mxu0 0
        %452 = vmatpush1.bf16.xpose.msra.mxu0 0
        %453 = vmatprep.subr.bf16.mxu0 0
        %454 = vmatpush1.bf16.xpose.msra.mxu0 0
        %455 = vmatprep.subr.bf16.mxu0 0
        %456 = vmatpush1.bf16.xpose.msra.mxu0 0
        %457 = vmatprep.subr.bf16.mxu0 0
        %458 = vmatpush1.bf16.xpose.msra.mxu0 0
        %459 = vmatprep.subr.bf16.mxu0 0
        %460 = vmatpush1.bf16.xpose.msra.mxu0 0
        %461 = vmatprep.subr.bf16.mxu0 0
        %462 = vmatpush1.bf16.xpose.msra.mxu0 0
        %463 = vmatprep.subr.bf16.mxu0 0
        %464 = vmatpush1.bf16.xpose.msra.mxu0 0
        %465 = vmatprep.subr.bf16.mxu0 0
        %466 = vmatpush1.bf16.xpose.msra.mxu0 0
        %467 = vmatprep.subr.bf16.mxu0 0
        %468 = vmatpush1.bf16.xpose.msra.mxu0 0
        %469 = vmatprep.subr.bf16.mxu0 0
        %470 = vmatpush1.bf16.xpose.msra.mxu0 0
        %471 = vmatprep.subr.bf16.mxu0 0
        %472 = vmatpush1.bf16.xpose.msra.mxu0 0
        %473 = vmatprep.subr.bf16.mxu0 0
        %474 = vmatpush1.bf16.xpose.msra.mxu0 0
        %475 = vmatprep.subr.bf16.mxu0 0
        %476 = vmatpush1.bf16.xpose.msra.mxu0 0
        %477 = vmatprep.mubr.bf16.mxu0 0
        %478 = vmatmul.mubr.bf16.gmra.mrb[0].mxu0 %v297
        %v479 = vpop.f32.mrb[0].mxu0
        %v480 = vadd.f32 0.0, %v479
        %v481 = vpop.f32.mrb[0].mxu0
        %v482 = vpop.f32.mrb[0].mxu0
        %v483 = vpop.f32.mrb[0].mxu0
        %484 = vdwg.mxu0
        %485 = vst.msk [vmem:[%s260] sm:$0xff] %vm295, %v480
        %s486 = sand.u32 %s121, 1
        %s487 = scalar_lea.sflag [#allocation3], %s486
        %s488 = sand.u32 %s121, 1
        %s489 = smul.addr %s488, 8
        %s490 = scalar_lea.vmem [#allocation2], %s489
        %s491 = sand.u32 %s24, 1
        %s492 = scalar_lea.sflag [#allocation5], %s491
        %s493 = sand.u32 %s147, 1
        %s494 = smul.addr %s493, 8
        %s495 = scalar_lea.vmem [#allocation4], %s494
        %s496 = sand.u32 %s24, 1
        %s497 = scalar_lea.sflag [#allocation5], %s496
        %s498 = sand.u32 %s173, 1
        %s499 = smul.addr %s498, 8
        %s500 = scalar_lea.vmem [#allocation6], %s499
        // Predicated region
        $region37: #{tpu_custom_call.1} parent=35 // pred_check
          %p501 = pneg %p131
        $region38: #{tpu_custom_call.1} parent=35 // pred_check_branch
          %503 = sbr.rel (%p501) target = $region40
        $region39: #{tpu_custom_call.1} parent=35 // pred_region
          %s505 = ssub.s32 128, 128
          %506 = vsyncadd %s487, %s505
          %s507 = smul.addr %s24, 128
          %s508 = scalar_lea.hbm %s4, %s507
          %s510 = sshll.u32 %s490, 4
          %s511 = int_to_ptr.vmem [resolvable:$true] %s510
          %513 = dma.vmem_to_hbm [thread:$0]  %s511, 128, %s508, %s487
        $region40: #{tpu_custom_call.1} parent=35 // pred_fallthru
          _
        // Predicated region
        $region41: #{tpu_custom_call.1} parent=35 // pred_check
          %p514 = pneg %p157
        $region42: #{tpu_custom_call.1} parent=35 // pred_check_branch
          %516 = sbr.rel (%p514) target = $region44
        $region43: #{tpu_custom_call.1} parent=35 // pred_region
          %s518 = ssub.s32 128, 128
          %519 = vsyncadd %s492, %s518
          %s520 = smul.addr %s24, 128
          %s521 = scalar_lea.hbm %s5, %s520
          %s523 = sshll.u32 %s495, 4
          %s524 = int_to_ptr.vmem [resolvable:$true] %s523
          %526 = dma.vmem_to_hbm [thread:$0]  %s524, 128, %s521, %s492
        $region44: #{tpu_custom_call.1} parent=35 // pred_fallthru
          _
        // Predicated region
        $region45: #{tpu_custom_call.1} parent=35 // pred_check
          %p527 = pneg %p183
        $region46: #{tpu_custom_call.1} parent=35 // pred_check_branch
          %529 = sbr.rel (%p527) target = $region48
        $region47: #{tpu_custom_call.1} parent=35 // pred_region
          %s531 = ssub.s32 128, 128
          %532 = vsyncadd %s497, %s531
          %s533 = smul.addr %s24, 128
          %s534 = scalar_lea.hbm %s6, %s533
          %s536 = sshll.u32 %s500, 4
          %s537 = int_to_ptr.vmem [resolvable:$true] %s536
          %539 = dma.vmem_to_hbm [thread:$0]  %s537, 128, %s534, %s497
        $region48: #{tpu_custom_call.1} parent=35 // pred_fallthru
          _
      $region36: #{tpu_custom_call.1} parent=5 // pred_fallthru
        _
      %p540 = scmp.le.s32.totalorder 2, %s19
      // Predicated region
      $region49: #{tpu_custom_call.1} parent=5 // pred_check
        %p541 = pneg %p540
      $region50: #{tpu_custom_call.1} parent=5 // pred_check_branch
        %543 = sbr.rel (%p541) target = $region52
      $region51: #{tpu_custom_call.1} parent=5 // pred_region
        %s544 = ssub.s32 %s19, 2
        // Predicated region
        $region53: #{tpu_custom_call.1} parent=51 // pred_check
          %p545 = pneg %p137
        $region54: #{tpu_custom_call.1} parent=51 // pred_check_branch
          %547 = sbr.rel (%p545) target = $region56
        $region55: #{tpu_custom_call.1} parent=51 // pred_region
          %s548 = sand.u32 %s122, 1
          %s549 = scalar_lea.sflag [#allocation3], %s548
          %s550 = sand.u32 %s122, 1
          %s551 = smul.addr %s550, 8
          %s552 = scalar_lea.vmem [#allocation2], %s551
          %553 = dma.done %s549, 128
        $region56: #{tpu_custom_call.1} parent=51 // pred_fallthru
          _
        // Predicated region
        $region57: #{tpu_custom_call.1} parent=51 // pred_check
          %p554 = pneg %p163
        $region58: #{tpu_custom_call.1} parent=51 // pred_check_branch
          %556 = sbr.rel (%p554) target = $region60
        $region59: #{tpu_custom_call.1} parent=51 // pred_region
          %s557 = sand.u32 %s25, 1
          %s558 = scalar_lea.sflag [#allocation5], %s557
          %s559 = sand.u32 %s148, 1
          %s560 = smul.addr %s559, 8
          %s561 = scalar_lea.vmem [#allocation4], %s560
          %562 = dma.done %s558, 128
        $region60: #{tpu_custom_call.1} parent=51 // pred_fallthru
          _
        // Predicated region
        $region61: #{tpu_custom_call.1} parent=51 // pred_check
          %p563 = pneg %p189
        $region62: #{tpu_custom_call.1} parent=51 // pred_check_branch
          %565 = sbr.rel (%p563) target = $region64
        $region63: #{tpu_custom_call.1} parent=51 // pred_region
          %s566 = sand.u32 %s25, 1
          %s567 = scalar_lea.sflag [#allocation5], %s566
          %s568 = sand.u32 %s174, 1
          %s569 = smul.addr %s568, 8
          %s570 = scalar_lea.vmem [#allocation6], %s569
          %571 = dma.done %s567, 128
        $region64: #{tpu_custom_call.1} parent=51 // pred_fallthru
          _
      $region52: #{tpu_custom_call.1} parent=5 // pred_fallthru
        _
    $region6: #{tpu_custom_call.1} parent=1 // loop_footer
      %s23 = sadd.s32 1, %s19
    $region7: #{tpu_custom_call.1} parent=1 // loop_footer_branch
      %18 = sbr.rel target = $region3
    $region8: #{tpu_custom_call.1} parent=1 // loop_exit
      _
    %572 = vsyncpa [#allocation3], 1
    %s573 = scalar_lea.sflag [#allocation3], 1
    %574 = vsyncpa %s573, 1
    %575 = vsyncpa [#allocation5], 1
    %s576 = scalar_lea.sflag [#allocation5], 1
    %577 = vsyncpa %s576, 1

// kernel: tpu_custom_call.1
$region0: #{tpu_custom_call.1}
  #allocation0 [shape = 'u32[]', space=smem, size = 0x4, offset = 0x4, fixed_abs, tag = 'smem constant byte address 0x4 - core index']
  #allocation1 [shape = 'u32[144,128]{1,0:T(1,128)}', space=vmem, size = 0x12000, scoped, tag = 'internal scratch']
  %s0 = inlined_call_operand.vmem [shape: bf16[16,32], index: 0, kind: input, shape index: {}]
  %s1 = inlined_call_operand.vmem [shape: bf16[64,32], index: 1, kind: input, shape index: {}]
  %s2 = inlined_call_operand.vmem [shape: bf16[48,32], index: 2, kind: input, shape index: {}]
  %s3 = inlined_call_operand.vmem [shape: bf16[32,32], index: 3, kind: input, shape index: {}]
  %s4 = inlined_call_operand.hbm [shape: f32[16,64], index: 4, kind: output, shape index: {0}]
  %s5 = inlined_call_operand.hbm [shape: f32[16,48], index: 5, kind: output, shape index: {1}]
  %s6 = inlined_call_operand.hbm [shape: f32[16,32], index: 6, kind: output, shape index: {2}]
  %7 = xla_tuple %s4, %s5, %s6
  %s8 = sld [smem:[#allocation0]]
  $region65: #{tpu_custom_call.1} parent=0
    _
  %s10 = ssub.s32 1, %s8
  %s11 = scalar_select 0, %s10, %s8
  $region1: #{tpu_custom_call.1} parent=0
    #allocation2 [shape = 'u8[8192]{0}', space=vmem, size = 0x2000, scoped, tag = 'output window, operand 0']
    #allocation3 [shape = 's32[2]{0}', space=sflag, size = 0x8, scoped, tag = 'scoped memory for tpu_custom_call.1']
    #allocation4 [shape = 'u8[8192]{0}', space=vmem, size = 0x2000, scoped, tag = 'output window, operand 1']
    #allocation5 [shape = 's32[2]{0}', space=sflag, size = 0x8, scoped, tag = 'scoped memory for tpu_custom_call.1']
    #allocation6 [shape = 'u8[8192]{0}', space=vmem, size = 0x2000, scoped, tag = 'output window, operand 2']
    %12 = vsyncpa [#allocation3], 0
    %s13 = scalar_lea.sflag [#allocation3], 1
    %14 = vsyncpa %s13, 0
    %15 = vsyncpa [#allocation5], 0
    %s16 = scalar_lea.sflag [#allocation5], 1
    %17 = vsyncpa %s16, 0
    loop: start=0, step=1, limit=4
    $region2: #{tpu_custom_call.1} parent=1 // loop_pre_header
      _
    $region3: #{tpu_custom_call.1} parent=1 // loop_header
      %s19 = sphi 0, %s23
      %p20 = scmp.ge.s32.totalorder %s19, 4
      %s29 = sphi 0, %s31
      %s32 = sphi 0, %s29
      %s33 = sphi 0, %s32
      %s49 = sphi 0, %s33
      %s53 = sphi 0, %s53
      %s55 = sphi 0, %s53
      %s56 = sphi 0, %s55
      %s70 = sphi 0, %s56
      %s74 = sphi 0, %s74
      %s76 = sphi 0, %s74
      %s77 = sphi 0, %s76
      %s91 = sphi 0, %s77
      %s95 = sphi 0, %s95
      %s97 = sphi 0, %s95
      %s98 = sphi 0, %s97
      %s112 = sphi 0, %s98
      %s118 = sphi 0, %s120
      %s121 = sphi 0, %s118
      %s122 = sphi 0, %s121
      %s138 = sphi 0, %s122
      %s144 = sphi 0, %s146
      %s147 = sphi 0, %s144
      %s148 = sphi 0, %s147
      %s164 = sphi 0, %s148
      %s170 = sphi 0, %s172
      %s173 = sphi 0, %s170
      %s174 = sphi 0, %s173
      %s190 = sphi 0, %s174
    $region4: #{tpu_custom_call.1} parent=1 // loop_header_branch
      %22 = sbr.rel (%p20) target = $region8
    $region5: #{tpu_custom_call.1} parent=1 // loop_body
      %s24 = ssub.s32 %s19, 1
      %s25 = ssub.s32 %s19, 2
      %s26 = sadd.s32 %s19, 1
      %s27 = ssub.s32 %s19, %s26
      %p28 = scmp.eq.s32.totalorder %s27, 0
      %s30 = sadd.s32 %s29, 1
      %s31 = scalar_select %p28, %s29, %s30
      %p34 = pneg %p28
      %p35 = scmp.eq.s32.totalorder %s19, 1
      %p36 = por %p34, %p35
      %p37 = scmp.ne.s32.totalorder %s29, %s32
      %p38 = scmp.eq.s32.totalorder %s19, 0
      %p39 = por %p37, %p38
      %p40 = scmp.ne.s32.totalorder %s29, %s32
      %p41 = scmp.eq.s32.totalorder %s24, 1
      %p42 = por %p40, %p41
      %p43 = scmp.ne.s32.totalorder %s32, %s33
      %p44 = scmp.eq.s32.totalorder %s24, 0
      %p45 = por %p43, %p44
      %p46 = scmp.ne.s32.totalorder %s32, %s33
      %p47 = scmp.eq.s32.totalorder %s25, 1
      %p48 = por %p46, %p47
      %p50 = scmp.ne.s32.totalorder %s33, %s49
      %p51 = scmp.eq.s32.totalorder %s25, 0
      %p52 = por %p50, %p51
      %s54 = sadd.s32 %s53, 1
      %p57 = scmp.eq.s32.totalorder %s19, 1
      %p58 = scmp.ne.s32.totalorder %s53, %s55
      %p59 = scmp.eq.s32.totalorder %s19, 0
      %p60 = por %p58, %p59
      %p61 = scmp.ne.s32.totalorder %s53, %s55
      %p62 = scmp.eq.s32.totalorder %s24, 1
      %p63 = por %p61, %p62
      %p64 = scmp.ne.s32.totalorder %s55, %s56
      %p65 = scmp.eq.s32.totalorder %s24, 0
      %p66 = por %p64, %p65
      %p67 = scmp.ne.s32.totalorder %s55, %s56
      %p68 = scmp.eq.s32.totalorder %s25, 1
      %p69 = por %p67, %p68
      %p71 = scmp.ne.s32.totalorder %s56, %s70
      %p72 = scmp.eq.s32.totalorder %s25, 0
      %p73 = por %p71, %p72
      %s75 = sadd.s32 %s74, 1
      %p78 = scmp.eq.s32.totalorder %s19, 1
      %p79 = scmp.ne.s32.totalorder %s74, %s76
      %p80 = scmp.eq.s32.totalorder %s19, 0
      %p81 = por %p79, %p80
      %p82 = scmp.ne.s32.totalorder %s74, %s76
      %p83 = scmp.eq.s32.totalorder %s24, 1
      %p84 = por %p82, %p83
      %p85 = scmp.ne.s32.totalorder %s76, %s77
      %p86 = scmp.eq.s32.totalorder %s24, 0
      %p87 = por %p85, %p86
      %p88 = scmp.ne.s32.totalorder %s76, %s77
      %p89 = scmp.eq.s32.totalorder %s25, 1
      %p90 = por %p88, %p89
      %p92 = scmp.ne.s32.totalorder %s77, %s91
      %p93 = scmp.eq.s32.totalorder %s25, 0
      %p94 = por %p92, %p93
      %s96 = sadd.s32 %s95, 1
      %p99 = scmp.eq.s32.totalorder %s19, 1
      %p100 = scmp.ne.s32.totalorder %s95, %s97
      %p101 = scmp.eq.s32.totalorder %s19, 0
      %p102 = por %p100, %p101
      %p103 = scmp.ne.s32.totalorder %s95, %s97
      %p104 = scmp.eq.s32.totalorder %s24, 1
      %p105 = por %p103, %p104
      %p106 = scmp.ne.s32.totalorder %s97, %s98
      %p107 = scmp.eq.s32.totalorder %s24, 0
      %p108 = por %p106, %p107
      %p109 = scmp.ne.s32.totalorder %s97, %s98
      %p110 = scmp.eq.s32.totalorder %s25, 1
      %p111 = por %p109, %p110
      %p113 = scmp.ne.s32.totalorder %s98, %s112
      %p114 = scmp.eq.s32.totalorder %s25, 0
      %p115 = por %p113, %p114
      %s116 = ssub.s32 %s19, %s26
      %p117 = scmp.eq.s32.totalorder %s116, 0
      %s119 = sadd.s32 %s118, 1
      %s120 = scalar_select %p117, %s118, %s119
      %p123 = pneg %p117
      %p124 = scmp.eq.s32.totalorder %s19, 1
      %p125 = por %p123, %p124
      %p126 = scmp.ne.s32.totalorder %s118, %s121
      %p127 = scmp.eq.s32.totalorder %s19, 0
      %p128 = por %p126, %p127
      %p129 = scmp.ne.s32.totalorder %s118, %s121
      %p130 = scmp.eq.s32.totalorder %s24, 1
      %p131 = por %p129, %p130
      %p132 = scmp.ne.s32.totalorder %s121, %s122
      %p133 = scmp.eq.s32.totalorder %s24, 0
      %p134 = por %p132, %p133
      %p135 = scmp.ne.s32.totalorder %s121, %s122
      %p136 = scmp.eq.s32.totalorder %s25, 1
      %p137 = por %p135, %p136
      %p139 = scmp.ne.s32.totalorder %s122, %s138
      %p140 = scmp.eq.s32.totalorder %s25, 0
      %p141 = por %p139, %p140
      %s142 = ssub.s32 %s19, %s26
      %p143 = scmp.eq.s32.totalorder %s142, 0
      %s145 = sadd.s32 %s144, 1
      %s146 = scalar_select %p143, %s144, %s145
      %p149 = pneg %p143
      %p150 = scmp.eq.s32.totalorder %s19, 1
      %p151 = por %p149, %p150
      %p152 = scmp.ne.s32.totalorder %s144, %s147
      %p153 = scmp.eq.s32.totalorder %s19, 0
      %p154 = por %p152, %p153
      %p155 = scmp.ne.s32.totalorder %s144, %s147
      %p156 = scmp.eq.s32.totalorder %s24, 1
      %p157 = por %p155, %p156
      %p158 = scmp.ne.s32.totalorder %s147, %s148
      %p159 = scmp.eq.s32.totalorder %s24, 0
      %p160 = por %p158, %p159
      %p161 = scmp.ne.s32.totalorder %s147, %s148
      %p162 = scmp.eq.s32.totalorder %s25, 1
      %p163 = por %p161, %p162
      %p165 = scmp.ne.s32.totalorder %s148, %s164
      %p166 = scmp.eq.s32.totalorder %s25, 0
      %p167 = por %p165, %p166
      %s168 = ssub.s32 %s19, %s26
      %p169 = scmp.eq.s32.totalorder %s168, 0
      %s171 = sadd.s32 %s170, 1
      %s172 = scalar_select %p169, %s170, %s171
      %p175 = pneg %p169
      %p176 = scmp.eq.s32.totalorder %s19, 1
      %p177 = por %p175, %p176
      %p178 = scmp.ne.s32.totalorder %s170, %s173
      %p179 = scmp.eq.s32.totalorder %s19, 0
      %p180 = por %p178, %p179
      %p181 = scmp.ne.s32.totalorder %s170, %s173
      %p182 = scmp.eq.s32.totalorder %s24, 1
      %p183 = por %p181, %p182
      %p184 = scmp.ne.s32.totalorder %s173, %s174
      %p185 = scmp.eq.s32.totalorder %s24, 0
      %p186 = por %p184, %p185
      %p187 = scmp.ne.s32.totalorder %s173, %s174
      %p188 = scmp.eq.s32.totalorder %s25, 1
      %p189 = por %p187, %p188
      %p191 = scmp.ne.s32.totalorder %s174, %s190
      %p192 = scmp.eq.s32.totalorder %s25, 0
      %p193 = por %p191, %p192
      %p194 = scmp.le.s32.totalorder 1, %s19
      %p195 = scmp.lt.s32.totalorder %s19, 3
      %p196 = pnand %p194, %p195
      %p197 = pneg %p196
      // Predicated region
      $region9: #{tpu_custom_call.1} parent=5 // pred_check
        _
      $region10: #{tpu_custom_call.1} parent=5 // pred_check_branch
        %199 = sbr.rel (%p196) target = $region12
      $region11: #{tpu_custom_call.1} parent=5 // pred_region
        %s200 = ssub.s32 %s19, 1
        // Predicated region
        $region13: #{tpu_custom_call.1} parent=11 // pred_check
          %p201 = pneg %p66
        $region14: #{tpu_custom_call.1} parent=11 // pred_check_branch
          %203 = sbr.rel (%p201) target = $region16
        $region15: #{tpu_custom_call.1} parent=11 // pred_region
          _
        $region16: #{tpu_custom_call.1} parent=11 // pred_fallthru
          _
        // Predicated region
        $region17: #{tpu_custom_call.1} parent=11 // pred_check
          %p204 = pneg %p87
        $region18: #{tpu_custom_call.1} parent=11 // pred_check_branch
          %206 = sbr.rel (%p204) target = $region20
        $region19: #{tpu_custom_call.1} parent=11 // pred_region
          _
        $region20: #{tpu_custom_call.1} parent=11 // pred_fallthru
          _
        // Predicated region
        $region21: #{tpu_custom_call.1} parent=11 // pred_check
          %p207 = pneg %p108
        $region22: #{tpu_custom_call.1} parent=11 // pred_check_branch
          %209 = sbr.rel (%p207) target = $region24
        $region23: #{tpu_custom_call.1} parent=11 // pred_region
          _
        $region24: #{tpu_custom_call.1} parent=11 // pred_fallthru
          _
      $region12: #{tpu_custom_call.1} parent=5 // pred_fallthru
        _
      %p210 = scmp.lt.s32.totalorder %s19, 2
      // Predicated region
      $region25: #{tpu_custom_call.1} parent=5 // pred_check
        %p211 = pneg %p210
      $region26: #{tpu_custom_call.1} parent=5 // pred_check_branch
        %213 = sbr.rel (%p211) target = $region28
      $region27: #{tpu_custom_call.1} parent=5 // pred_region
        // Predicated region
        $region29: #{tpu_custom_call.1} parent=27 // pred_check
          %p214 = pneg %p39
        $region30: #{tpu_custom_call.1} parent=27 // pred_check_branch
          %216 = sbr.rel (%p214) target = $region32
        $region31: #{tpu_custom_call.1} parent=27 // pred_region
          %p217 = scmp.lt.s32.totalorder %s19, 1
          %s218 = scalar_select %p217, %s19, 1
          %s219 = smul.addr %s218, 4
          %s220 = scalar_lea.vmem %s0, %s219
        $region32: #{tpu_custom_call.1} parent=27 // pred_fallthru
          _
      $region28: #{tpu_custom_call.1} parent=5 // pred_fallthru
        _
      %p221 = scmp.le.s32.totalorder 1, %s19
      %p222 = scmp.lt.s32.totalorder %s19, 3
      %p223 = pnand %p221, %p222
      %p224 = pneg %p223
      // Predicated region
      $region33: #{tpu_custom_call.1} parent=5 // pred_check
        _
      $region34: #{tpu_custom_call.1} parent=5 // pred_check_branch
        %226 = sbr.rel (%p223) target = $region36
      $region35: #{tpu_custom_call.1} parent=5 // pred_region
        %s227 = ssub.s32 %s19, 1
        %p228 = scmp.lt.s32.totalorder %s24, 1
        %s229 = scalar_select %p228, %s24, 1
        %s230 = smul.addr %s229, 4
        %s231 = scalar_lea.vmem %s0, %s230
        %p232 = pneg %p45
        %p233 = pneg %p42
        %p234 = pneg %p66
        %p235 = pneg %p63
        %p236 = pneg %p87
        %p237 = pneg %p84
        %p238 = pneg %p108
        %p239 = pneg %p105
        %p240 = pneg %p134
        %p241 = pneg %p131
        %s242 = sand.u32 %s121, 1
        %s243 = scalar_lea.sflag [#allocation3], %s242
        %s244 = sand.u32 %s121, 1
        %s245 = smul.addr %s244, 8
        %s246 = scalar_lea.vmem [#allocation2], %s245
        %p247 = pneg %p160
        %p248 = pneg %p157
        %s249 = sand.u32 %s24, 1
        %s250 = scalar_lea.sflag [#allocation5], %s249
        %s251 = sand.u32 %s147, 1
        %s252 = smul.addr %s251, 8
        %s253 = scalar_lea.vmem [#allocation4], %s252
        %p254 = pneg %p186
        %p255 = pneg %p183
        %s256 = sand.u32 %s24, 1
        %s257 = scalar_lea.sflag [#allocation5], %s256
        %s258 = sand.u32 %s173, 1
        %s259 = smul.addr %s258, 8
        %s260 = scalar_lea.vmem [#allocation6], %s259
        %p261 = scmp.lt.s32.totalorder %s24, 1
        %s262 = scalar_select %p261, %s24, 1
        %s263 = smul.addr %s262, 4
        %s264 = scalar_lea.vmem %s0, %s263
        %v266 = vld [vmem:[%s264] sm:$0xf]
        %v267 = vld [vmem:[%s1] sm:$0xf]
        %v268 = vld [vmem:[%s1 + $0x4] sm:$0xf]
        %v269 = vld [vmem:[%s1 + $0x8] sm:$0xf]
        %v270 = vld [vmem:[%s1 + $0xc] sm:$0xf]
        %v271 = vld [vmem:[%s1 + $0x10] sm:$0xf]
        %v272 = vld [vmem:[%s1 + $0x14] sm:$0xf]
        %v273 = vld [vmem:[%s1 + $0x18] sm:$0xf]
        %v274 = vld [vmem:[%s1 + $0x1c] sm:$0xf]
        %v283 = vunpack.c.l.b16 %v267
        %v284 = vunpack.c.l.b16 %v268
        %v285 = vunpack.c.l.b16 %v269
        %v286 = vunpack.c.l.b16 %v270
        %v287 = vunpack.c.l.b16 %v271
        %v288 = vunpack.c.l.b16 %v272
        %v289 = vunpack.c.l.b16 %v273
        %v290 = vunpack.c.l.b16 %v274
        %v291 = vpack.c.b16 %v284, %v283
        %v292 = vpack.c.b16 %v286, %v285
        %v293 = vpack.c.b16 %v288, %v287
        %v294 = vpack.c.b16 %v290, %v289
        %vm295 = vcmask 261120
        %v297 = vsel %vm295, %v266, 0
        %v300 = vsel %vm295, %v291, 0
        %v303 = vsel %vm295, %v292, 0
        %v306 = vsel %vm295, %v293, 0
        %v309 = vsel %vm295, %v294, 0
        %311 = vmatprep.subr.bf16.mxu0 0
        %312 = vmatpush1.bf16.xpose.msra.mxu0 %v300
        %313 = vmatprep.subr.bf16.mxu0 0
        %314 = vmatpush1.bf16.xpose.msra.mxu0 %v303
        %315 = vmatprep.subr.bf16.mxu0 0
        %316 = vmatpush1.bf16.xpose.msra.mxu0 %v306
        %317 = vmatprep.subr.bf16.mxu0 0
        %318 = vmatpush1.bf16.xpose.msra.mxu0 %v309
        %319 = vmatprep.subr.bf16.mxu0 0
        %320 = vmatpush1.bf16.xpose.msra.mxu0 0
        %321 = vmatprep.subr.bf16.mxu0 0
        %322 = vmatpush1.bf16.xpose.msra.mxu0 0
        %323 = vmatprep.subr.bf16.mxu0 0
        %324 = vmatpush1.bf16.xpose.msra.mxu0 0
        %325 = vmatprep.subr.bf16.mxu0 0
        %326 = vmatpush1.bf16.xpose.msra.mxu0 0
        %327 = vmatprep.subr.bf16.mxu0 0
        %328 = vmatpush1.bf16.xpose.msra.mxu0 0
        %329 = vmatprep.subr.bf16.mxu0 0
        %330 = vmatpush1.bf16.xpose.msra.mxu0 0
        %331 = vmatprep.subr.bf16.mxu0 0
        %332 = vmatpush1.bf16.xpose.msra.mxu0 0
        %333 = vmatprep.subr.bf16.mxu0 0
        %334 = vmatpush1.bf16.xpose.msra.mxu0 0
        %335 = vmatprep.subr.bf16.mxu0 0
        %336 = vmatpush1.bf16.xpose.msra.mxu0 0
        %337 = vmatprep.subr.bf16.mxu0 0
        %338 = vmatpush1.bf16.xpose.msra.mxu0 0
        %339 = vmatprep.subr.bf16.mxu0 0
        %340 = vmatpush1.bf16.xpose.msra.mxu0 0
        %341 = vmatprep.subr.bf16.mxu0 0
        %342 = vmatpush1.bf16.xpose.msra.mxu0 0
        %343 = vmatprep.mubr.bf16.mxu0 0
        %344 = vmatmul.mubr.bf16.gmra.mrb[0].mxu0 %v297
        %v345 = vpop.f32.mrb[0].mxu0
        %v346 = vadd.f32 0.0, %v345
        %v347 = vpop.f32.mrb[0].mxu0
        %v348 = vpop.f32.mrb[0].mxu0
        %v349 = vpop.f32.mrb[0].mxu0
        %350 = vdwg.mxu0
        %vm351 = vcmask 523264
        %352 = vst.msk [vmem:[%s246] sm:$0xff] %vm351, %v346
        %v353 = vld [vmem:[%s2] sm:$0xf]
        %v354 = vld [vmem:[%s2 + $0x4] sm:$0xf]
        %v355 = vld [vmem:[%s2 + $0x8] sm:$0xf]
        %v356 = vld [vmem:[%s2 + $0xc] sm:$0xf]
        %v357 = vld [vmem:[%s2 + $0x10] sm:$0xf]
        %v358 = vld [vmem:[%s2 + $0x14] sm:$0xf]
        %v365 = vunpack.c.l.b16 %v353
        %v366 = vunpack.c.l.b16 %v354
        %v367 = vunpack.c.l.b16 %v355
        %v368 = vunpack.c.l.b16 %v356
        %v369 = vunpack.c.l.b16 %v357
        %v370 = vunpack.c.l.b16 %v358
        %v371 = vpack.c.b16 %v366, %v365
        %v372 = vpack.c.b16 %v368, %v367
        %v373 = vpack.c.b16 %v370, %v369
        %v375 = vsel %vm295, %v371, 0
        %v378 = vsel %vm295, %v372, 0
        %v381 = vsel %vm295, %v373, 0
        %383 = vmatprep.subr.bf16.mxu0 0
        %384 = vmatpush1.bf16.xpose.msra.mxu0 %v375
        %385 = vmatprep.subr.bf16.mxu0 0
        %386 = vmatpush1.bf16.xpose.msra.mxu0 %v378
        %387 = vmatprep.subr.bf16.mxu0 0
        %388 = vmatpush1.bf16.xpose.msra.mxu0 %v381
        %389 = vmatprep.subr.bf16.mxu0 0
        %390 = vmatpush1.bf16.xpose.msra.mxu0 0
        %391 = vmatprep.subr.bf16.mxu0 0
        %392 = vmatpush1.bf16.xpose.msra.mxu0 0
        %393 = vmatprep.subr.bf16.mxu0 0
        %394 = vmatpush1.bf16.xpose.msra.mxu0 0
        %395 = vmatprep.subr.bf16.mxu0 0
        %396 = vmatpush1.bf16.xpose.msra.mxu0 0
        %397 = vmatprep.subr.bf16.mxu0 0
        %398 = vmatpush1.bf16.xpose.msra.mxu0 0
        %399 = vmatprep.subr.bf16.mxu0 0
        %400 = vmatpush1.bf16.xpose.msra.mxu0 0
        %401 = vmatprep.subr.bf16.mxu0 0
        %402 = vmatpush1.bf16.xpose.msra.mxu0 0
        %403 = vmatprep.subr.bf16.mxu0 0
        %404 = vmatpush1.bf16.xpose.msra.mxu0 0
        %405 = vmatprep.subr.bf16.mxu0 0
        %406 = vmatpush1.bf16.xpose.msra.mxu0 0
        %407 = vmatprep.subr.bf16.mxu0 0
        %408 = vmatpush1.bf16.xpose.msra.mxu0 0
        %409 = vmatprep.subr.bf16.mxu0 0
        %410 = vmatpush1.bf16.xpose.msra.mxu0 0
        %411 = vmatprep.subr.bf16.mxu0 0
        %412 = vmatpush1.bf16.xpose.msra.mxu0 0
        %413 = vmatprep.subr.bf16.mxu0 0
        %414 = vmatpush1.bf16.xpose.msra.mxu0 0
        %415 = vmatprep.mubr.bf16.mxu0 0
        %416 = vmatmul.mubr.bf16.gmra.mrb[0].mxu0 %v297
        %v417 = vpop.f32.mrb[0].mxu0
        %v418 = vadd.f32 0.0, %v417
        %v419 = vpop.f32.mrb[0].mxu0
        %v420 = vpop.f32.mrb[0].mxu0
        %v421 = vpop.f32.mrb[0].mxu0
        %422 = vdwg.mxu0
        %vm423 = vcmask 392192
        %424 = vst.msk [vmem:[%s253] sm:$0xff] %vm423, %v418
        %v425 = vld [vmem:[%s3] sm:$0xf]
        %v426 = vld [vmem:[%s3 + $0x4] sm:$0xf]
        %v427 = vld [vmem:[%s3 + $0x8] sm:$0xf]
        %v428 = vld [vmem:[%s3 + $0xc] sm:$0xf]
        %v433 = vunpack.c.l.b16 %v425
        %v434 = vunpack.c.l.b16 %v426
        %v435 = vunpack.c.l.b16 %v427
        %v436 = vunpack.c.l.b16 %v428
        %v437 = vpack.c.b16 %v434, %v433
        %v438 = vpack.c.b16 %v436, %v435
        %v440 = vsel %vm295, %v437, 0
        %v443 = vsel %vm295, %v438, 0
        %445 = vmatprep.subr.bf16.mxu0 0
        %446 = vmatpush1.bf16.xpose.msra.mxu0 %v440
        %447 = vmatprep.subr.bf16.mxu0 0
        %448 = vmatpush1.bf16.xpose.msra.mxu0 %v443
        %449 = vmatprep.subr.bf16.mxu0 0
        %450 = vmatpush1.bf16.xpose.msra.mxu0 0
        %451 = vmatprep.subr.bf16.mxu0 0
        %452 = vmatpush1.bf16.xpose.msra.mxu0 0
        %453 = vmatprep.subr.bf16.mxu0 0
        %454 = vmatpush1.bf16.xpose.msra.mxu0 0
        %455 = vmatprep.subr.bf16.mxu0 0
        %456 = vmatpush1.bf16.xpose.msra.mxu0 0
        %457 = vmatprep.subr.bf16.mxu0 0
        %458 = vmatpush1.bf16.xpose.msra.mxu0 0
        %459 = vmatprep.subr.bf16.mxu0 0
        %460 = vmatpush1.bf16.xpose.msra.mxu0 0
        %461 = vmatprep.subr.bf16.mxu0 0
        %462 = vmatpush1.bf16.xpose.msra.mxu0 0
        %463 = vmatprep.subr.bf16.mxu0 0
        %464 = vmatpush1.bf16.xpose.msra.mxu0 0
        %465 = vmatprep.subr.bf16.mxu0 0
        %466 = vmatpush1.bf16.xpose.msra.mxu0 0
        %467 = vmatprep.subr.bf16.mxu0 0
        %468 = vmatpush1.bf16.xpose.msra.mxu0 0
        %469 = vmatprep.subr.bf16.mxu0 0
        %470 = vmatpush1.bf16.xpose.msra.mxu0 0
        %471 = vmatprep.subr.bf16.mxu0 0
        %472 = vmatpush1.bf16.xpose.msra.mxu0 0
        %473 = vmatprep.subr.bf16.mxu0 0
        %474 = vmatpush1.bf16.xpose.msra.mxu0 0
        %475 = vmatprep.subr.bf16.mxu0 0
        %476 = vmatpush1.bf16.xpose.msra.mxu0 0
        %477 = vmatprep.mubr.bf16.mxu0 0
        %478 = vmatmul.mubr.bf16.gmra.mrb[0].mxu0 %v297
        %v479 = vpop.f32.mrb[0].mxu0
        %v480 = vadd.f32 0.0, %v479
        %v481 = vpop.f32.mrb[0].mxu0
        %v482 = vpop.f32.mrb[0].mxu0
        %v483 = vpop.f32.mrb[0].mxu0
        %484 = vdwg.mxu0
        %485 = vst.msk [vmem:[%s260] sm:$0xff] %vm295, %v480
        %s486 = sand.u32 %s121, 1
        %s487 = scalar_lea.sflag [#allocation3], %s486
        %s488 = sand.u32 %s121, 1
        %s489 = smul.addr %s488, 8
        %s490 = scalar_lea.vmem [#allocation2], %s489
        %s491 = sand.u32 %s24, 1
        %s492 = scalar_lea.sflag [#allocation5], %s491
        %s493 = sand.u32 %s147, 1
        %s494 = smul.addr %s493, 8
        %s495 = scalar_lea.vmem [#allocation4], %s494
        %s496 = sand.u32 %s24, 1
        %s497 = scalar_lea.sflag [#allocation5], %s496
        %s498 = sand.u32 %s173, 1
        %s499 = smul.addr %s498, 8
        %s500 = scalar_lea.vmem [#allocation6], %s499
        // Predicated region
        $region37: #{tpu_custom_call.1} parent=35 // pred_check
          %p501 = pneg %p131
        $region38: #{tpu_custom_call.1} parent=35 // pred_check_branch
          %503 = sbr.rel (%p501) target = $region40
        $region39: #{tpu_custom_call.1} parent=35 // pred_region
          %s505 = ssub.s32 128, 128
          %506 = vsyncadd %s487, %s505
          %s507 = smul.addr %s24, 128
          %s508 = scalar_lea.hbm %s4, %s507
          %s510 = sshll.u32 %s490, 4
          %s511 = int_to_ptr.vmem [resolvable:$true] %s510
          %513 = dma.vmem_to_hbm [thread:$0]  %s511, 128, %s508, %s487
        $region40: #{tpu_custom_call.1} parent=35 // pred_fallthru
          _
        // Predicated region
        $region41: #{tpu_custom_call.1} parent=35 // pred_check
          %p514 = pneg %p157
        $region42: #{tpu_custom_call.1} parent=35 // pred_check_branch
          %516 = sbr.rel (%p514) target = $region44
        $region43: #{tpu_custom_call.1} parent=35 // pred_region
          %s518 = ssub.s32 128, 128
          %519 = vsyncadd %s492, %s518
          %s520 = smul.addr %s24, 128
          %s521 = scalar_lea.hbm %s5, %s520
          %s523 = sshll.u32 %s495, 4
          %s524 = int_to_ptr.vmem [resolvable:$true] %s523
          %526 = dma.vmem_to_hbm [thread:$0]  %s524, 128, %s521, %s492
        $region44: #{tpu_custom_call.1} parent=35 // pred_fallthru
          _
        // Predicated region
        $region45: #{tpu_custom_call.1} parent=35 // pred_check
          %p527 = pneg %p183
        $region46: #{tpu_custom_call.1} parent=35 // pred_check_branch
          %529 = sbr.rel (%p527) target = $region48
        $region47: #{tpu_custom_call.1} parent=35 // pred_region
          %s531 = ssub.s32 128, 128
          %532 = vsyncadd %s497, %s531
          %s533 = smul.addr %s24, 128
          %s534 = scalar_lea.hbm %s6, %s533
          %s536 = sshll.u32 %s500, 4
          %s537 = int_to_ptr.vmem [resolvable:$true] %s536
          %539 = dma.vmem_to_hbm [thread:$0]  %s537, 128, %s534, %s497
        $region48: #{tpu_custom_call.1} parent=35 // pred_fallthru
          _
      $region36: #{tpu_custom_call.1} parent=5 // pred_fallthru
        _
      %p540 = scmp.le.s32.totalorder 2, %s19
      // Predicated region
      $region49: #{tpu_custom_call.1} parent=5 // pred_check
        %p541 = pneg %p540
      $region50: #{tpu_custom_call.1} parent=5 // pred_check_branch
        %543 = sbr.rel (%p541) target = $region52
      $region51: #{tpu_custom_call.1} parent=5 // pred_region
        %s544 = ssub.s32 %s19, 2
        // Predicated region
        $region53: #{tpu_custom_call.1} parent=51 // pred_check
          %p545 = pneg %p137
        $region54: #{tpu_custom_call.1} parent=51 // pred_check_branch
          %547 = sbr.rel (%p545) target = $region56
        $region55: #{tpu_custom_call.1} parent=51 // pred_region
          %s548 = sand.u32 %s122, 1
          %s549 = scalar_lea.sflag [#allocation3], %s548
          %s550 = sand.u32 %s122, 1
          %s551 = smul.addr %s550, 8
          %s552 = scalar_lea.vmem [#allocation2], %s551
          %553 = dma.done %s549, 128
        $region56: #{tpu_custom_call.1} parent=51 // pred_fallthru
          _
        // Predicated region
        $region57: #{tpu_custom_call.1} parent=51 // pred_check
          %p554 = pneg %p163
        $region58: #{tpu_custom_call.1} parent=51 // pred_check_branch
          %556 = sbr.rel (%p554) target = $region60
        $region59: #{tpu_custom_call.1} parent=51 // pred_region
          %s557 = sand.u32 %s25, 1
          %s558 = scalar_lea.sflag [#allocation5], %s557
          %s559 = sand.u32 %s148, 1
          %s560 = smul.addr %s559, 8
          %s561 = scalar_lea.vmem [#allocation4], %s560
          %562 = dma.done %s558, 128
        $region60: #{tpu_custom_call.1} parent=51 // pred_fallthru
          _
        // Predicated region
        $region61: #{tpu_custom_call.1} parent=51 // pred_check
          %p563 = pneg %p189
        $region62: #{tpu_custom_call.1} parent=51 // pred_check_branch
          %565 = sbr.rel (%p563) target = $region64
        $region63: #{tpu_custom_call.1} parent=51 // pred_region
          %s566 = sand.u32 %s25, 1
          %s567 = scalar_lea.sflag [#allocation5], %s566
          %s568 = sand.u32 %s174, 1
          %s569 = smul.addr %s568, 8
          %s570 = scalar_lea.vmem [#allocation6], %s569
          %571 = dma.done %s567, 128
        $region64: #{tpu_custom_call.1} parent=51 // pred_fallthru
          _
      $region52: #{tpu_custom_call.1} parent=5 // pred_fallthru
        _
    $region6: #{tpu_custom_call.1} parent=1 // loop_footer
      %s23 = sadd.s32 1, %s19
    $region7: #{tpu_custom_call.1} parent=1 // loop_footer_branch
      %18 = sbr.rel target = $region3
    $region8: #{tpu_custom_call.1} parent=1 // loop_exit
      _
    %572 = vsyncpa [#allocation3], 1
    %s573 = scalar_lea.sflag [#allocation3], 1
    %574 = vsyncpa %s573, 1
    %575 = vsyncpa [#allocation5], 1
    %s576 = scalar_lea.sflag [#allocation5], 1
    %577 = vsyncpa %s576, 1

</llo_original>
